<compile_context>
chip_gen: v5e
topology: v5e:2x2
jax: 0.10.0
libtpu: 0.0.40
codegen_flags: <defaults>
</compile_context>

<pallas_src>
import jax
import jax.numpy as jnp
from jax import lax
from jax.experimental import pallas as pl
from jax.experimental.pallas import tpu as pltpu


def cbow_kernel(ids_ref, wf_ref, b1_ref, w2_ref, b2_ref, out_ref):
    # ids_ref: (TB, C) int32      wf_ref: (V, H) bf16   (= emb @ w_in / C)
    # b1_ref:  (1, H)  f32        w2_ref: (H, V) bf16
    # b2_ref:  (1, V)  f32        out_ref: (TB, V) f32
    tb, ctx = ids_ref.shape
    vocab = wf_ref.shape[0]

    # --- fused embedding gather + context mean (gather-as-matmul) ----------
    # counts[b, v] = #{c : ids[b, c] == v}   (unnormalized; 1/C is folded into
    # wf_ref in f32 by the wrapper).  Built directly in bf16: sums of <= C
    # zeros/ones are exact in bf16 and this halves the vreg footprint.
    ids = ids_ref[...]                                          # (TB, C) int32
    iota_v = lax.broadcasted_iota(jnp.int32, (tb, vocab), 1)    # (TB, V)
    counts = jnp.zeros((tb, vocab), jnp.bfloat16)
    for c in range(ctx):                                        # C small & static
        counts = counts + (iota_v == ids[:, c:c + 1]).astype(jnp.bfloat16)

    # --- (folded embedding-mean + linear_in) + ReLU --------------------------
    # h = relu(mean_c emb[ids[b,c]] @ W_in + b1) == relu(counts @ w_fold + b1)
    h = jnp.dot(counts, wf_ref[...],
                preferred_element_type=jnp.float32)             # (TB, H) f32
    h = jnp.maximum(h + b1_ref[...], 0.0)

    # --- linear_out -----------------------------------------------------------
    logits = jnp.dot(h.astype(w2_ref.dtype), w2_ref[...],
                     preferred_element_type=jnp.float32)        # (TB, V) f32
    logits = logits + b2_ref[...]

    # --- numerically stable log_softmax over the vocab (lane) axis -----------
    m = jnp.max(logits, axis=-1, keepdims=True)
    shifted = logits - m
    lse = jnp.log(jnp.sum(jnp.exp(shifted), axis=-1, keepdims=True))
    out_ref[...] = shifted - lse


def word2vec_forward(input_labels, emb_table, w_in, b_in, w_out, b_out):
    """input_labels: (B, C) int32 token ids -> (B, V) f32 log-probs."""
    B, C = input_labels.shape
    V, E = emb_table.shape
    H = w_in.shape[1]
    assert B % 8 == 0, "batch must be a multiple of 8 (sublane tile)"

    # Batch tile: 128 rows when possible (lane/sublane friendly, and with an
    # even number of tiles the 'parallel' axis splits cleanly across v7x's 2
    # TensorCores); otherwise run the whole batch as one tile.
    TB = 128 if B % 128 == 0 else B
    grid = (B // TB,)

    ids = input_labels.astype(jnp.int32)
    # Fold the embedding matmul and the 1/C mean into the first linear, in f32
    # (exact 1/C for any C), then cast once to bf16 for the MXU.
    w_fold = ((emb_table.astype(jnp.float32) @ w_in.astype(jnp.float32))
              * (1.0 / C)).astype(jnp.bfloat16)                 # (V, H)
    w2_bf16 = w_out.astype(jnp.bfloat16)                        # (H, V)
    b1 = b_in.reshape(1, H).astype(jnp.float32)
    b2 = b_out.reshape(1, V).astype(jnp.float32)

    return pl.pallas_call(
        cbow_kernel,
        out_shape=jax.ShapeDtypeStruct((B, V), jnp.float32),
        grid=grid,
        in_specs=[
            pl.BlockSpec((TB, C), lambda i: (i, 0)),   # ids: tiled over batch
            pl.BlockSpec((V, H), lambda i: (0, 0)),    # folded emb@w_in/C (resident)
            pl.BlockSpec((1, H), lambda i: (0, 0)),    # b_in
            pl.BlockSpec((H, V), lambda i: (0, 0)),    # w_out
            pl.BlockSpec((1, V), lambda i: (0, 0)),    # b_out
        ],
        out_specs=pl.BlockSpec((TB, V), lambda i: (i, 0)),   # lane-dense (V=128)
        compiler_params=pltpu.CompilerParams(
            dimension_semantics=("parallel",)),        # 2-TC sharding on v7x
    )(ids, w_fold, b1, w2_bf16, b2)


def _reference(input_labels, emb_table, w_in, b_in, w_out, b_out):
    emb = emb_table[input_labels]
    avg = jnp.mean(emb, axis=1)
    h = jax.nn.relu(avg @ w_in + b_in)
    logits = h @ w_out + b_out
    return jax.nn.log_softmax(logits, axis=-1)


if __name__ == "__main__":
    # Shapes consistent with the module: vocab_size=128,
    # word_embedding_size=32, hidden=64, context window C=4.
    # Batch chosen so the kernel has an even number of batch tiles (2) along
    # the parallel grid axis.
    V, E, H = 128, 32, 64
    B, C = 256, 4

    key = jax.random.PRNGKey(0)
    k_emb, k_w1, k_b1, k_w2, k_b2, k_ids = jax.random.split(key, 6)

    emb_table = jax.random.normal(k_emb, (V, E), dtype=jnp.float32)
    # PyTorch Linear weight is (out, in); we store the transpose (in, out).
    w_in = jax.random.normal(k_w1, (E, H), dtype=jnp.float32) * 0.1
    b_in = jax.random.normal(k_b1, (H,), dtype=jnp.float32) * 0.1
    w_out = jax.random.normal(k_w2, (H, V), dtype=jnp.float32) * 0.1
    b_out = jax.random.normal(k_b2, (V,), dtype=jnp.float32) * 0.1

    input_labels = jax.random.randint(k_ids, (B, C), 0, V, dtype=jnp.int32)

    out = word2vec_forward(input_labels, emb_table, w_in, b_in, w_out, b_out)
    out = jax.block_until_ready(out)

    ref = _reference(input_labels, emb_table, w_in, b_in, w_out, b_out)
    assert out.shape == (B, V)
    # bf16 weights inside the kernel vs f32 reference -> loosened tolerance
    # (do not treat this kernel as bit-matching the torch model).
    max_err = float(jnp.max(jnp.abs(out - ref)))
    assert jnp.allclose(out, ref, atol=2e-2, rtol=2e-2), max_err

    print("KERNEL_OK")
</pallas_src>

<mosaic_0001>
module attributes {stable_mosaic.version = 11 : i64} {
  func.func @cbow_kernel(%arg0: i32, %arg1: memref<128x4xi32, #tpu.memory_space<vmem>>, %arg2: memref<128x64xbf16, #tpu.memory_space<vmem>>, %arg3: memref<1x64xf32, #tpu.memory_space<vmem>>, %arg4: memref<64x128xbf16, #tpu.memory_space<vmem>>, %arg5: memref<1x128xf32, #tpu.memory_space<vmem>>, %arg6: memref<128x128xf32, #tpu.memory_space<vmem>>) attributes {dimension_semantics = [#tpu.dimension_semantics<parallel>], iteration_bounds = array<i64: 2>, scalar_prefetch = 0 : i64, scratch_operands = 0 : i64, tpu.core_type = #tpu.core_type<tc>, window_params = [{transform_indices = @transform_0, window_bounds = array<i64: 128, 4>}, {pipeline_mode = #tpu.pipeline_mode<synchronous>, transform_indices = @transform_1, window_bounds = array<i64: 128, 64>}, {pipeline_mode = #tpu.pipeline_mode<synchronous>, transform_indices = @transform_2, window_bounds = array<i64: 1, 64>}, {pipeline_mode = #tpu.pipeline_mode<synchronous>, transform_indices = @transform_3, window_bounds = array<i64: 64, 128>}, {pipeline_mode = #tpu.pipeline_mode<synchronous>, transform_indices = @transform_4, window_bounds = array<i64: 1, 128>}, {transform_indices = @transform_5, window_bounds = array<i64: 128, 128>}]} {
    %c0 = arith.constant 0 : index
    %c0_0 = arith.constant 0 : index
    %0 = vector.load %arg1[%c0, %c0_0] : memref<128x4xi32, #tpu.memory_space<vmem>>, vector<128x4xi32>
    %1 = tpu.iota {dimensions = array<i32: 1>} : vector<128x128xi32>
    %cst = arith.constant 0.000000e+00 : bf16
    %2 = vector.broadcast %cst : bf16 to vector<128x128xbf16>
    %3 = vector.extract_strided_slice %0 {offsets = [0, 0], sizes = [128, 1], strides = [1, 1]} : vector<128x4xi32> to vector<128x1xi32>
    %4 = vector.broadcast %3 : vector<128x1xi32> to vector<128x128xi32>
    %5 = arith.cmpi eq, %1, %4 : vector<128x128xi32>
    %6 = arith.extui %5 : vector<128x128xi1> to vector<128x128xi32>
    %7 = arith.sitofp %6 : vector<128x128xi32> to vector<128x128xf32>
    %8 = arith.truncf %7 : vector<128x128xf32> to vector<128x128xbf16>
    %9 = arith.addf %2, %8 : vector<128x128xbf16>
    %10 = vector.extract_strided_slice %0 {offsets = [0, 1], sizes = [128, 1], strides = [1, 1]} : vector<128x4xi32> to vector<128x1xi32>
    %11 = vector.broadcast %10 : vector<128x1xi32> to vector<128x128xi32>
    %12 = arith.cmpi eq, %1, %11 : vector<128x128xi32>
    %13 = arith.extui %12 : vector<128x128xi1> to vector<128x128xi32>
    %14 = arith.sitofp %13 : vector<128x128xi32> to vector<128x128xf32>
    %15 = arith.truncf %14 : vector<128x128xf32> to vector<128x128xbf16>
    %16 = arith.addf %9, %15 : vector<128x128xbf16>
    %17 = vector.extract_strided_slice %0 {offsets = [0, 2], sizes = [128, 1], strides = [1, 1]} : vector<128x4xi32> to vector<128x1xi32>
    %18 = vector.broadcast %17 : vector<128x1xi32> to vector<128x128xi32>
    %19 = arith.cmpi eq, %1, %18 : vector<128x128xi32>
    %20 = arith.extui %19 : vector<128x128xi1> to vector<128x128xi32>
    %21 = arith.sitofp %20 : vector<128x128xi32> to vector<128x128xf32>
    %22 = arith.truncf %21 : vector<128x128xf32> to vector<128x128xbf16>
    %23 = arith.addf %16, %22 : vector<128x128xbf16>
    %24 = vector.extract_strided_slice %0 {offsets = [0, 3], sizes = [128, 1], strides = [1, 1]} : vector<128x4xi32> to vector<128x1xi32>
    %25 = vector.broadcast %24 : vector<128x1xi32> to vector<128x128xi32>
    %26 = arith.cmpi eq, %1, %25 : vector<128x128xi32>
    %27 = arith.extui %26 : vector<128x128xi1> to vector<128x128xi32>
    %28 = arith.sitofp %27 : vector<128x128xi32> to vector<128x128xf32>
    %29 = arith.truncf %28 : vector<128x128xf32> to vector<128x128xbf16>
    %30 = arith.addf %23, %29 : vector<128x128xbf16>
    %c0_1 = arith.constant 0 : index
    %c0_2 = arith.constant 0 : index
    %31 = vector.load %arg2[%c0_1, %c0_2] : memref<128x64xbf16, #tpu.memory_space<vmem>>, vector<128x64xbf16>
    %cst_3 = arith.constant dense<0.000000e+00> : vector<128x64xf32>
    %32 = tpu.matmul %30, %31, %cst_3 {dimension_numbers = #tpu.dot_dimension_numbers<[1], [0], [0], [1], [0, 0, 1, 1], [], []>} : vector<128x128xbf16>, vector<128x64xbf16>, vector<128x64xf32> -> vector<128x64xf32>
    %c0_4 = arith.constant 0 : index
    %c0_5 = arith.constant 0 : index
    %33 = vector.load %arg3[%c0_4, %c0_5] : memref<1x64xf32, #tpu.memory_space<vmem>>, vector<1x64xf32>
    %34 = vector.broadcast %33 : vector<1x64xf32> to vector<128x64xf32>
    %35 = arith.addf %32, %34 : vector<128x64xf32>
    %cst_6 = arith.constant 0.000000e+00 : f32
    %36 = vector.broadcast %cst_6 : f32 to vector<128x64xf32>
    %37 = arith.maximumf %35, %36 : vector<128x64xf32>
    %38 = arith.truncf %37 : vector<128x64xf32> to vector<128x64xbf16>
    %c0_7 = arith.constant 0 : index
    %c0_8 = arith.constant 0 : index
    %39 = vector.load %arg4[%c0_7, %c0_8] : memref<64x128xbf16, #tpu.memory_space<vmem>>, vector<64x128xbf16>
    %cst_9 = arith.constant dense<0.000000e+00> : vector<128x128xf32>
    %40 = tpu.matmul %38, %39, %cst_9 {dimension_numbers = #tpu.dot_dimension_numbers<[1], [0], [0], [1], [0, 0, 1, 1], [], []>} : vector<128x64xbf16>, vector<64x128xbf16>, vector<128x128xf32> -> vector<128x128xf32>
    %c0_10 = arith.constant 0 : index
    %c0_11 = arith.constant 0 : index
    %41 = vector.load %arg5[%c0_10, %c0_11] : memref<1x128xf32, #tpu.memory_space<vmem>>, vector<1x128xf32>
    %42 = vector.broadcast %41 : vector<1x128xf32> to vector<128x128xf32>
    %43 = arith.addf %40, %42 : vector<128x128xf32>
    %cst_12 = arith.constant dense<0xFF800000> : vector<128xf32>
    %44 = vector.multi_reduction <maximumf>, %43, %cst_12 [1] : vector<128x128xf32> to vector<128xf32>
    %45 = vector.shape_cast %44 : vector<128xf32> to vector<128x1xf32>
    %46 = vector.broadcast %45 : vector<128x1xf32> to vector<128x128xf32>
    %47 = arith.subf %43, %46 : vector<128x128xf32>
    %48 = math.exp %47 : vector<128x128xf32>
    %cst_13 = arith.constant dense<0.000000e+00> : vector<128xf32>
    %49 = vector.multi_reduction <add>, %48, %cst_13 [1] : vector<128x128xf32> to vector<128xf32>
    %50 = vector.shape_cast %49 : vector<128xf32> to vector<128x1xf32>
    %51 = math.log %50 : vector<128x1xf32>
    %52 = vector.broadcast %51 : vector<128x1xf32> to vector<128x128xf32>
    %53 = arith.subf %47, %52 : vector<128x128xf32>
    %c0_14 = arith.constant 0 : index
    %c0_15 = arith.constant 0 : index
    %54 = vector.load %arg6[%c0_14, %c0_15] : memref<128x128xf32, #tpu.memory_space<vmem>>, vector<128x128xf32>
    tpu.vector_store %arg6[%c0_14, %c0_15], %53 {strides = array<i32>} : memref<128x128xf32, #tpu.memory_space<vmem>>, vector<128x128xf32>,
    return
  }
  func.func @transform_0(%arg0: i32) -> (i32, i32) {
    %c0_i32 = arith.constant 0 : i32
    %c0_i32_0 = arith.constant 0 : i32
    return %arg0, %c0_i32 : i32, i32
  }
  func.func @transform_1(%arg0: i32) -> (i32, i32) {
    %c0_i32 = arith.constant 0 : i32
    %c0_i32_0 = arith.constant 0 : i32
    %c0_i32_1 = arith.constant 0 : i32
    return %c0_i32, %c0_i32_0 : i32, i32
  }
  func.func @transform_2(%arg0: i32) -> (i32, i32) {
    %c0_i32 = arith.constant 0 : i32
    %c0_i32_0 = arith.constant 0 : i32
    %c0_i32_1 = arith.constant 0 : i32
    return %c0_i32, %c0_i32_0 : i32, i32
  }
  func.func @transform_3(%arg0: i32) -> (i32, i32) {
    %c0_i32 = arith.constant 0 : i32
    %c0_i32_0 = arith.constant 0 : i32
    %c0_i32_1 = arith.constant 0 : i32
    return %c0_i32, %c0_i32_0 : i32, i32
  }
  func.func @transform_4(%arg0: i32) -> (i32, i32) {
    %c0_i32 = arith.constant 0 : i32
    %c0_i32_0 = arith.constant 0 : i32
    %c0_i32_1 = arith.constant 0 : i32
    return %c0_i32, %c0_i32_0 : i32, i32
  }
  func.func @transform_5(%arg0: i32) -> (i32, i32) {
    %c0_i32 = arith.constant 0 : i32
    %c0_i32_0 = arith.constant 0 : i32
    return %arg0, %c0_i32 : i32, i32
  }
}

</mosaic_0001>

<llo_original>
// kernel: tpu_custom_call.1
$region0: #{tpu_custom_call.1}
  #allocation0 [shape = 'u32[]', space=smem, size = 0x4, offset = 0x4, fixed_abs, tag = 'smem constant byte address 0x4 - core index']
  #allocation1 [shape = 'u32[72,128]{1,0:T(1,128)}', space=vmem, size = 0x9000, scoped, tag = 'internal scratch']
  %s0 = inlined_call_operand.vmem [shape: s32[256,4], index: 0, kind: input, shape index: {}]
  %s1 = inlined_call_operand.vmem [shape: bf16[128,64], index: 1, kind: input, shape index: {}]
  %s2 = inlined_call_operand.vmem [shape: f32[1,64], index: 2, kind: input, shape index: {}]
  %s3 = inlined_call_operand.vmem [shape: bf16[64,128], index: 3, kind: input, shape index: {}]
  %s4 = inlined_call_operand.vmem [shape: f32[1,128], index: 4, kind: input, shape index: {}]
  %s5 = inlined_call_operand.hbm [shape: f32[256,128], index: 5, kind: output, shape index: {}]
  %s6 = sld [smem:[#allocation0]]
  $region53: #{tpu_custom_call.1} parent=0
    _
  %s8 = ssub.s32 1, %s6
  %s9 = scalar_select 0, %s8, %s6
  $region1: #{tpu_custom_call.1} parent=0
    #allocation2 [shape = 'u8[131072]{0}', space=vmem, size = 0x20000, scoped, tag = 'output window, operand 0']
    #allocation3 [shape = 's32[2]{0}', space=sflag, size = 0x8, scoped, tag = 'scoped memory for tpu_custom_call.1']
    %10 = vsyncpa [#allocation3], 0
    %s11 = scalar_lea.sflag [#allocation3], 1
    %12 = vsyncpa %s11, 0
    loop: start=0, step=1, limit=4
    $region2: #{tpu_custom_call.1} parent=1 // loop_pre_header
      _
    $region3: #{tpu_custom_call.1} parent=1 // loop_header
      %s14 = sphi 0, %s18
      %p15 = scmp.ge.s32.totalorder %s14, 4
      %s24 = sphi 0, %s26
      %s27 = sphi 0, %s24
      %s28 = sphi 0, %s27
      %s44 = sphi 0, %s28
      %s48 = sphi 0, %s48
      %s50 = sphi 0, %s48
      %s51 = sphi 0, %s50
      %s65 = sphi 0, %s51
      %s69 = sphi 0, %s69
      %s71 = sphi 0, %s69
      %s72 = sphi 0, %s71
      %s86 = sphi 0, %s72
      %s90 = sphi 0, %s90
      %s92 = sphi 0, %s90
      %s93 = sphi 0, %s92
      %s107 = sphi 0, %s93
      %s111 = sphi 0, %s111
      %s113 = sphi 0, %s111
      %s114 = sphi 0, %s113
      %s128 = sphi 0, %s114
      %s134 = sphi 0, %s136
      %s137 = sphi 0, %s134
      %s138 = sphi 0, %s137
      %s154 = sphi 0, %s138
    $region4: #{tpu_custom_call.1} parent=1 // loop_header_branch
      %17 = sbr.rel (%p15) target = $region8
    $region5: #{tpu_custom_call.1} parent=1 // loop_body
      %s19 = ssub.s32 %s14, 1
      %s20 = ssub.s32 %s14, 2
      %s21 = sadd.s32 %s14, 1
      %s22 = ssub.s32 %s14, %s21
      %p23 = scmp.eq.s32.totalorder %s22, 0
      %s25 = sadd.s32 %s24, 1
      %s26 = scalar_select %p23, %s24, %s25
      %p29 = pneg %p23
      %p30 = scmp.eq.s32.totalorder %s14, 1
      %p31 = por %p29, %p30
      %p32 = scmp.ne.s32.totalorder %s24, %s27
      %p33 = scmp.eq.s32.totalorder %s14, 0
      %p34 = por %p32, %p33
      %p35 = scmp.ne.s32.totalorder %s24, %s27
      %p36 = scmp.eq.s32.totalorder %s19, 1
      %p37 = por %p35, %p36
      %p38 = scmp.ne.s32.totalorder %s27, %s28
      %p39 = scmp.eq.s32.totalorder %s19, 0
      %p40 = por %p38, %p39
      %p41 = scmp.ne.s32.totalorder %s27, %s28
      %p42 = scmp.eq.s32.totalorder %s20, 1
      %p43 = por %p41, %p42
      %p45 = scmp.ne.s32.totalorder %s28, %s44
      %p46 = scmp.eq.s32.totalorder %s20, 0
      %p47 = por %p45, %p46
      %s49 = sadd.s32 %s48, 1
      %p52 = scmp.eq.s32.totalorder %s14, 1
      %p53 = scmp.ne.s32.totalorder %s48, %s50
      %p54 = scmp.eq.s32.totalorder %s14, 0
      %p55 = por %p53, %p54
      %p56 = scmp.ne.s32.totalorder %s48, %s50
      %p57 = scmp.eq.s32.totalorder %s19, 1
      %p58 = por %p56, %p57
      %p59 = scmp.ne.s32.totalorder %s50, %s51
      %p60 = scmp.eq.s32.totalorder %s19, 0
      %p61 = por %p59, %p60
      %p62 = scmp.ne.s32.totalorder %s50, %s51
      %p63 = scmp.eq.s32.totalorder %s20, 1
      %p64 = por %p62, %p63
      %p66 = scmp.ne.s32.totalorder %s51, %s65
      %p67 = scmp.eq.s32.totalorder %s20, 0
      %p68 = por %p66, %p67
      %s70 = sadd.s32 %s69, 1
      %p73 = scmp.eq.s32.totalorder %s14, 1
      %p74 = scmp.ne.s32.totalorder %s69, %s71
      %p75 = scmp.eq.s32.totalorder %s14, 0
      %p76 = por %p74, %p75
      %p77 = scmp.ne.s32.totalorder %s69, %s71
      %p78 = scmp.eq.s32.totalorder %s19, 1
      %p79 = por %p77, %p78
      %p80 = scmp.ne.s32.totalorder %s71, %s72
      %p81 = scmp.eq.s32.totalorder %s19, 0
      %p82 = por %p80, %p81
      %p83 = scmp.ne.s32.totalorder %s71, %s72
      %p84 = scmp.eq.s32.totalorder %s20, 1
      %p85 = por %p83, %p84
      %p87 = scmp.ne.s32.totalorder %s72, %s86
      %p88 = scmp.eq.s32.totalorder %s20, 0
      %p89 = por %p87, %p88
      %s91 = sadd.s32 %s90, 1
      %p94 = scmp.eq.s32.totalorder %s14, 1
      %p95 = scmp.ne.s32.totalorder %s90, %s92
      %p96 = scmp.eq.s32.totalorder %s14, 0
      %p97 = por %p95, %p96
      %p98 = scmp.ne.s32.totalorder %s90, %s92
      %p99 = scmp.eq.s32.totalorder %s19, 1
      %p100 = por %p98, %p99
      %p101 = scmp.ne.s32.totalorder %s92, %s93
      %p102 = scmp.eq.s32.totalorder %s19, 0
      %p103 = por %p101, %p102
      %p104 = scmp.ne.s32.totalorder %s92, %s93
      %p105 = scmp.eq.s32.totalorder %s20, 1
      %p106 = por %p104, %p105
      %p108 = scmp.ne.s32.totalorder %s93, %s107
      %p109 = scmp.eq.s32.totalorder %s20, 0
      %p110 = por %p108, %p109
      %s112 = sadd.s32 %s111, 1
      %p115 = scmp.eq.s32.totalorder %s14, 1
      %p116 = scmp.ne.s32.totalorder %s111, %s113
      %p117 = scmp.eq.s32.totalorder %s14, 0
      %p118 = por %p116, %p117
      %p119 = scmp.ne.s32.totalorder %s111, %s113
      %p120 = scmp.eq.s32.totalorder %s19, 1
      %p121 = por %p119, %p120
      %p122 = scmp.ne.s32.totalorder %s113, %s114
      %p123 = scmp.eq.s32.totalorder %s19, 0
      %p124 = por %p122, %p123
      %p125 = scmp.ne.s32.totalorder %s113, %s114
      %p126 = scmp.eq.s32.totalorder %s20, 1
      %p127 = por %p125, %p126
      %p129 = scmp.ne.s32.totalorder %s114, %s128
      %p130 = scmp.eq.s32.totalorder %s20, 0
      %p131 = por %p129, %p130
      %s132 = ssub.s32 %s14, %s21
      %p133 = scmp.eq.s32.totalorder %s132, 0
      %s135 = sadd.s32 %s134, 1
      %s136 = scalar_select %p133, %s134, %s135
      %p139 = pneg %p133
      %p140 = scmp.eq.s32.totalorder %s14, 1
      %p141 = por %p139, %p140
      %p142 = scmp.ne.s32.totalorder %s134, %s137
      %p143 = scmp.eq.s32.totalorder %s14, 0
      %p144 = por %p142, %p143
      %p145 = scmp.ne.s32.totalorder %s134, %s137
      %p146 = scmp.eq.s32.totalorder %s19, 1
      %p147 = por %p145, %p146
      %p148 = scmp.ne.s32.totalorder %s137, %s138
      %p149 = scmp.eq.s32.totalorder %s19, 0
      %p150 = por %p148, %p149
      %p151 = scmp.ne.s32.totalorder %s137, %s138
      %p152 = scmp.eq.s32.totalorder %s20, 1
      %p153 = por %p151, %p152
      %p155 = scmp.ne.s32.totalorder %s138, %s154
      %p156 = scmp.eq.s32.totalorder %s20, 0
      %p157 = por %p155, %p156
      %p158 = scmp.le.s32.totalorder 1, %s14
      %p159 = scmp.lt.s32.totalorder %s14, 3
      %p160 = pnand %p158, %p159
      %p161 = pneg %p160
      // Predicated region
      $region9: #{tpu_custom_call.1} parent=5 // pred_check
        _
      $region10: #{tpu_custom_call.1} parent=5 // pred_check_branch
        %163 = sbr.rel (%p160) target = $region12
      $region11: #{tpu_custom_call.1} parent=5 // pred_region
        %s164 = ssub.s32 %s14, 1
        // Predicated region
        $region13: #{tpu_custom_call.1} parent=11 // pred_check
          %p165 = pneg %p61
        $region14: #{tpu_custom_call.1} parent=11 // pred_check_branch
          %167 = sbr.rel (%p165) target = $region16
        $region15: #{tpu_custom_call.1} parent=11 // pred_region
          _
        $region16: #{tpu_custom_call.1} parent=11 // pred_fallthru
          _
        // Predicated region
        $region17: #{tpu_custom_call.1} parent=11 // pred_check
          %p168 = pneg %p82
        $region18: #{tpu_custom_call.1} parent=11 // pred_check_branch
          %170 = sbr.rel (%p168) target = $region20
        $region19: #{tpu_custom_call.1} parent=11 // pred_region
          _
        $region20: #{tpu_custom_call.1} parent=11 // pred_fallthru
          _
        // Predicated region
        $region21: #{tpu_custom_call.1} parent=11 // pred_check
          %p171 = pneg %p103
        $region22: #{tpu_custom_call.1} parent=11 // pred_check_branch
          %173 = sbr.rel (%p171) target = $region24
        $region23: #{tpu_custom_call.1} parent=11 // pred_region
          _
        $region24: #{tpu_custom_call.1} parent=11 // pred_fallthru
          _
        // Predicated region
        $region25: #{tpu_custom_call.1} parent=11 // pred_check
          %p174 = pneg %p124
        $region26: #{tpu_custom_call.1} parent=11 // pred_check_branch
          %176 = sbr.rel (%p174) target = $region28
        $region27: #{tpu_custom_call.1} parent=11 // pred_region
          _
        $region28: #{tpu_custom_call.1} parent=11 // pred_fallthru
          _
      $region12: #{tpu_custom_call.1} parent=5 // pred_fallthru
        _
      %p177 = scmp.lt.s32.totalorder %s14, 2
      // Predicated region
      $region29: #{tpu_custom_call.1} parent=5 // pred_check
        %p178 = pneg %p177
      $region30: #{tpu_custom_call.1} parent=5 // pred_check_branch
        %180 = sbr.rel (%p178) target = $region32
      $region31: #{tpu_custom_call.1} parent=5 // pred_region
        // Predicated region
        $region33: #{tpu_custom_call.1} parent=31 // pred_check
          %p181 = pneg %p34
        $region34: #{tpu_custom_call.1} parent=31 // pred_check_branch
          %183 = sbr.rel (%p181) target = $region36
        $region35: #{tpu_custom_call.1} parent=31 // pred_region
          %s184 = smul.u32 16, %s14
          %p185 = scmp.lt.s32.totalorder %s184, 31
          %s186 = scalar_select %p185, %s184, 31
          %s187 = smul.addr %s186, 8
          %s188 = scalar_lea.vmem %s0, %s187
          %s189 = smul.u32 16, %s14
        $region36: #{tpu_custom_call.1} parent=31 // pred_fallthru
          _
      $region32: #{tpu_custom_call.1} parent=5 // pred_fallthru
        _
      %p190 = scmp.le.s32.totalorder 1, %s14
      %p191 = scmp.lt.s32.totalorder %s14, 3
      %p192 = pnand %p190, %p191
      %p193 = pneg %p192
      // Predicated region
      $region37: #{tpu_custom_call.1} parent=5 // pred_check
        _
      $region38: #{tpu_custom_call.1} parent=5 // pred_check_branch
        %195 = sbr.rel (%p192) target = $region40
      $region39: #{tpu_custom_call.1} parent=5 // pred_region
        %s196 = ssub.s32 %s14, 1
        %s197 = smul.u32 16, %s19
        %p198 = scmp.lt.s32.totalorder %s197, 31
        %s199 = scalar_select %p198, %s197, 31
        %s200 = smul.addr %s199, 8
        %s201 = scalar_lea.vmem %s0, %s200
        %p202 = pneg %p40
        %p203 = pneg %p37
        %p204 = pneg %p61
        %p205 = pneg %p58
        %p206 = pneg %p82
        %p207 = pneg %p79
        %p208 = pneg %p103
        %p209 = pneg %p100
        %p210 = pneg %p124
        %p211 = pneg %p121
        %p212 = pneg %p150
        %p213 = pneg %p147
        %s214 = sand.u32 %s137, 1
        %s215 = scalar_lea.sflag [#allocation3], %s214
        %s216 = sand.u32 %s137, 1
        %s217 = smul.addr %s216, 128
        %s218 = scalar_lea.vmem [#allocation2], %s217
        %s219 = smul.u32 16, %s19
        %p220 = scmp.lt.s32.totalorder %s219, 31
        %s221 = scalar_select %p220, %s219, 31
        %s222 = smul.addr %s221, 8
        %s223 = scalar_lea.vmem %s0, %s222
        %s224 = smul.u32 16, %s19
        %s225 = smul.u32 16, %s19
        %v227 = vld [vmem:[%s223] sm:$0xff]
        %v228 = vld [vmem:[%s223 + $0x8] sm:$0xff]
        %v229 = vld [vmem:[%s223 + $0x10] sm:$0xff]
        %v230 = vld [vmem:[%s223 + $0x18] sm:$0xff]
        %v231 = vld [vmem:[%s223 + $0x20] sm:$0xff]
        %v232 = vld [vmem:[%s223 + $0x28] sm:$0xff]
        %v233 = vld [vmem:[%s223 + $0x30] sm:$0xff]
        %v234 = vld [vmem:[%s223 + $0x38] sm:$0xff]
        %v235 = vld [vmem:[%s223 + $0x40] sm:$0xff]
        %v236 = vld [vmem:[%s223 + $0x48] sm:$0xff]
        %v237 = vld [vmem:[%s223 + $0x50] sm:$0xff]
        %v238 = vld [vmem:[%s223 + $0x58] sm:$0xff]
        %v239 = vld [vmem:[%s223 + $0x60] sm:$0xff]
        %v240 = vld [vmem:[%s223 + $0x68] sm:$0xff]
        %v241 = vld [vmem:[%s223 + $0x70] sm:$0xff]
        %v242 = vld [vmem:[%s223 + $0x78] sm:$0xff]
        %v243 = vlaneseq
        %v244 = vand.u32 %v243, 127
        %245 = vset.pattern.permute.xlu0 0
        %246 = vperm.xlu0 %245, %v227
        %v247 = vpop.permute.xlu0 %246
        %248 = vset.pattern.permute.xlu0 0
        %249 = vperm.xlu0 %248, %v228
        %v250 = vpop.permute.xlu0 %249
        %251 = vset.pattern.permute.xlu0 0
        %252 = vperm.xlu0 %251, %v229
        %v253 = vpop.permute.xlu0 %252
        %254 = vset.pattern.permute.xlu0 0
        %255 = vperm.xlu0 %254, %v230
        %v256 = vpop.permute.xlu0 %255
        %257 = vset.pattern.permute.xlu0 0
        %258 = vperm.xlu0 %257, %v231
        %v259 = vpop.permute.xlu0 %258
        %260 = vset.pattern.permute.xlu0 0
        %261 = vperm.xlu0 %260, %v232
        %v262 = vpop.permute.xlu0 %261
        %263 = vset.pattern.permute.xlu0 0
        %264 = vperm.xlu0 %263, %v233
        %v265 = vpop.permute.xlu0 %264
        %266 = vset.pattern.permute.xlu0 0
        %267 = vperm.xlu0 %266, %v234
        %v268 = vpop.permute.xlu0 %267
        %269 = vset.pattern.permute.xlu0 0
        %270 = vperm.xlu0 %269, %v235
        %v271 = vpop.permute.xlu0 %270
        %272 = vset.pattern.permute.xlu0 0
        %273 = vperm.xlu0 %272, %v236
        %v274 = vpop.permute.xlu0 %273
        %275 = vset.pattern.permute.xlu0 0
        %276 = vperm.xlu0 %275, %v237
        %v277 = vpop.permute.xlu0 %276
        %278 = vset.pattern.permute.xlu0 0
        %279 = vperm.xlu0 %278, %v238
        %v280 = vpop.permute.xlu0 %279
        %281 = vset.pattern.permute.xlu0 0
        %282 = vperm.xlu0 %281, %v239
        %v283 = vpop.permute.xlu0 %282
        %284 = vset.pattern.permute.xlu0 0
        %285 = vperm.xlu0 %284, %v240
        %v286 = vpop.permute.xlu0 %285
        %287 = vset.pattern.permute.xlu0 0
        %288 = vperm.xlu0 %287, %v241
        %v289 = vpop.permute.xlu0 %288
        %290 = vset.pattern.permute.xlu0 0
        %291 = vperm.xlu0 %290, %v242
        %v292 = vpop.permute.xlu0 %291
        %vm293 = vcmp.eq.s32.totalorder %v244, %v247
        %vm294 = vcmp.eq.s32.totalorder %v244, %v250
        %vm295 = vcmp.eq.s32.totalorder %v244, %v253
        %vm296 = vcmp.eq.s32.totalorder %v244, %v256
        %vm297 = vcmp.eq.s32.totalorder %v244, %v259
        %vm298 = vcmp.eq.s32.totalorder %v244, %v262
        %vm299 = vcmp.eq.s32.totalorder %v244, %v265
        %vm300 = vcmp.eq.s32.totalorder %v244, %v268
        %vm301 = vcmp.eq.s32.totalorder %v244, %v271
        %vm302 = vcmp.eq.s32.totalorder %v244, %v274
        %vm303 = vcmp.eq.s32.totalorder %v244, %v277
        %vm304 = vcmp.eq.s32.totalorder %v244, %v280
        %vm305 = vcmp.eq.s32.totalorder %v244, %v283
        %vm306 = vcmp.eq.s32.totalorder %v244, %v286
        %vm307 = vcmp.eq.s32.totalorder %v244, %v289
        %vm308 = vcmp.eq.s32.totalorder %v244, %v292
        %v309 = vsel %vm293, 1, 0
        %v310 = vsel %vm294, 1, 0
        %v311 = vsel %vm295, 1, 0
        %v312 = vsel %vm296, 1, 0
        %v313 = vsel %vm297, 1, 0
        %v314 = vsel %vm298, 1, 0
        %v315 = vsel %vm299, 1, 0
        %v316 = vsel %vm300, 1, 0
        %v317 = vsel %vm301, 1, 0
        %v318 = vsel %vm302, 1, 0
        %v319 = vsel %vm303, 1, 0
        %v320 = vsel %vm304, 1, 0
        %v321 = vsel %vm305, 1, 0
        %v322 = vsel %vm306, 1, 0
        %v323 = vsel %vm307, 1, 0
        %v324 = vsel %vm308, 1, 0
        %v325 = vcvt.s32.f32 %v309
        %v326 = vcvt.s32.f32 %v310
        %v327 = vcvt.s32.f32 %v311
        %v328 = vcvt.s32.f32 %v312
        %v329 = vcvt.s32.f32 %v313
        %v330 = vcvt.s32.f32 %v314
        %v331 = vcvt.s32.f32 %v315
        %v332 = vcvt.s32.f32 %v316
        %v333 = vcvt.s32.f32 %v317
        %v334 = vcvt.s32.f32 %v318
        %v335 = vcvt.s32.f32 %v319
        %v336 = vcvt.s32.f32 %v320
        %v337 = vcvt.s32.f32 %v321
        %v338 = vcvt.s32.f32 %v322
        %v339 = vcvt.s32.f32 %v323
        %v340 = vcvt.s32.f32 %v324
        %v341 = vpack.c.bf16 %v325, %v325
        %v342 = vpack.c.bf16 %v326, %v326
        %v343 = vpack.c.bf16 %v327, %v327
        %v344 = vpack.c.bf16 %v328, %v328
        %v345 = vpack.c.bf16 %v329, %v329
        %v346 = vpack.c.bf16 %v330, %v330
        %v347 = vpack.c.bf16 %v331, %v331
        %v348 = vpack.c.bf16 %v332, %v332
        %v349 = vpack.c.bf16 %v333, %v333
        %v350 = vpack.c.bf16 %v334, %v334
        %v351 = vpack.c.bf16 %v335, %v335
        %v352 = vpack.c.bf16 %v336, %v336
        %v353 = vpack.c.bf16 %v337, %v337
        %v354 = vpack.c.bf16 %v338, %v338
        %v355 = vpack.c.bf16 %v339, %v339
        %v356 = vpack.c.bf16 %v340, %v340
        %v357 = vunpack.c.l.bf16 %v341
        %v358 = vunpack.c.l.bf16 %v342
        %v359 = vunpack.c.l.bf16 %v343
        %v360 = vunpack.c.l.bf16 %v344
        %v361 = vunpack.c.l.bf16 %v345
        %v362 = vunpack.c.l.bf16 %v346
        %v363 = vunpack.c.l.bf16 %v347
        %v364 = vunpack.c.l.bf16 %v348
        %v365 = vunpack.c.l.bf16 %v349
        %v366 = vunpack.c.l.bf16 %v350
        %v367 = vunpack.c.l.bf16 %v351
        %v368 = vunpack.c.l.bf16 %v352
        %v369 = vunpack.c.l.bf16 %v353
        %v370 = vunpack.c.l.bf16 %v354
        %v371 = vunpack.c.l.bf16 %v355
        %v372 = vunpack.c.l.bf16 %v356
        %v373 = vadd.f32 %v357, 0.0
        %v374 = vadd.f32 %v358, 0.0
        %v375 = vadd.f32 %v359, 0.0
        %v376 = vadd.f32 %v360, 0.0
        %v377 = vadd.f32 %v361, 0.0
        %v378 = vadd.f32 %v362, 0.0
        %v379 = vadd.f32 %v363, 0.0
        %v380 = vadd.f32 %v364, 0.0
        %v381 = vadd.f32 %v365, 0.0
        %v382 = vadd.f32 %v366, 0.0
        %v383 = vadd.f32 %v367, 0.0
        %v384 = vadd.f32 %v368, 0.0
        %v385 = vadd.f32 %v369, 0.0
        %v386 = vadd.f32 %v370, 0.0
        %v387 = vadd.f32 %v371, 0.0
        %v388 = vadd.f32 %v372, 0.0
        %v389 = vpack.c.bf16 %v373, %v373
        %v390 = vpack.c.bf16 %v374, %v374
        %v391 = vpack.c.bf16 %v375, %v375
        %v392 = vpack.c.bf16 %v376, %v376
        %v393 = vpack.c.bf16 %v377, %v377
        %v394 = vpack.c.bf16 %v378, %v378
        %v395 = vpack.c.bf16 %v379, %v379
        %v396 = vpack.c.bf16 %v380, %v380
        %v397 = vpack.c.bf16 %v381, %v381
        %v398 = vpack.c.bf16 %v382, %v382
        %v399 = vpack.c.bf16 %v383, %v383
        %v400 = vpack.c.bf16 %v384, %v384
        %v401 = vpack.c.bf16 %v385, %v385
        %v402 = vpack.c.bf16 %v386, %v386
        %v403 = vpack.c.bf16 %v387, %v387
        %v404 = vpack.c.bf16 %v388, %v388
        %405 = vset.pattern.permute.xlu0 1
        %406 = vperm.xlu0 %405, %v227
        %v407 = vpop.permute.xlu0 %406
        %408 = vset.pattern.permute.xlu0 1
        %409 = vperm.xlu0 %408, %v228
        %v410 = vpop.permute.xlu0 %409
        %411 = vset.pattern.permute.xlu0 1
        %412 = vperm.xlu0 %411, %v229
        %v413 = vpop.permute.xlu0 %412
        %414 = vset.pattern.permute.xlu0 1
        %415 = vperm.xlu0 %414, %v230
        %v416 = vpop.permute.xlu0 %415
        %417 = vset.pattern.permute.xlu0 1
        %418 = vperm.xlu0 %417, %v231
        %v419 = vpop.permute.xlu0 %418
        %420 = vset.pattern.permute.xlu0 1
        %421 = vperm.xlu0 %420, %v232
        %v422 = vpop.permute.xlu0 %421
        %423 = vset.pattern.permute.xlu0 1
        %424 = vperm.xlu0 %423, %v233
        %v425 = vpop.permute.xlu0 %424
        %426 = vset.pattern.permute.xlu0 1
        %427 = vperm.xlu0 %426, %v234
        %v428 = vpop.permute.xlu0 %427
        %429 = vset.pattern.permute.xlu0 1
        %430 = vperm.xlu0 %429, %v235
        %v431 = vpop.permute.xlu0 %430
        %432 = vset.pattern.permute.xlu0 1
        %433 = vperm.xlu0 %432, %v236
        %v434 = vpop.permute.xlu0 %433
        %435 = vset.pattern.permute.xlu0 1
        %436 = vperm.xlu0 %435, %v237
        %v437 = vpop.permute.xlu0 %436
        %438 = vset.pattern.permute.xlu0 1
        %439 = vperm.xlu0 %438, %v238
        %v440 = vpop.permute.xlu0 %439
        %441 = vset.pattern.permute.xlu0 1
        %442 = vperm.xlu0 %441, %v239
        %v443 = vpop.permute.xlu0 %442
        %444 = vset.pattern.permute.xlu0 1
        %445 = vperm.xlu0 %444, %v240
        %v446 = vpop.permute.xlu0 %445
        %447 = vset.pattern.permute.xlu0 1
        %448 = vperm.xlu0 %447, %v241
        %v449 = vpop.permute.xlu0 %448
        %450 = vset.pattern.permute.xlu0 1
        %451 = vperm.xlu0 %450, %v242
        %v452 = vpop.permute.xlu0 %451
        %vm453 = vcmp.eq.s32.totalorder %v244, %v407
        %vm454 = vcmp.eq.s32.totalorder %v244, %v410
        %vm455 = vcmp.eq.s32.totalorder %v244, %v413
        %vm456 = vcmp.eq.s32.totalorder %v244, %v416
        %vm457 = vcmp.eq.s32.totalorder %v244, %v419
        %vm458 = vcmp.eq.s32.totalorder %v244, %v422
        %vm459 = vcmp.eq.s32.totalorder %v244, %v425
        %vm460 = vcmp.eq.s32.totalorder %v244, %v428
        %vm461 = vcmp.eq.s32.totalorder %v244, %v431
        %vm462 = vcmp.eq.s32.totalorder %v244, %v434
        %vm463 = vcmp.eq.s32.totalorder %v244, %v437
        %vm464 = vcmp.eq.s32.totalorder %v244, %v440
        %vm465 = vcmp.eq.s32.totalorder %v244, %v443
        %vm466 = vcmp.eq.s32.totalorder %v244, %v446
        %vm467 = vcmp.eq.s32.totalorder %v244, %v449
        %vm468 = vcmp.eq.s32.totalorder %v244, %v452
        %v469 = vsel %vm453, 1, 0
        %v470 = vsel %vm454, 1, 0
        %v471 = vsel %vm455, 1, 0
        %v472 = vsel %vm456, 1, 0
        %v473 = vsel %vm457, 1, 0
        %v474 = vsel %vm458, 1, 0
        %v475 = vsel %vm459, 1, 0
        %v476 = vsel %vm460, 1, 0
        %v477 = vsel %vm461, 1, 0
        %v478 = vsel %vm462, 1, 0
        %v479 = vsel %vm463, 1, 0
        %v480 = vsel %vm464, 1, 0
        %v481 = vsel %vm465, 1, 0
        %v482 = vsel %vm466, 1, 0
        %v483 = vsel %vm467, 1, 0
        %v484 = vsel %vm468, 1, 0
        %v485 = vcvt.s32.f32 %v469
        %v486 = vcvt.s32.f32 %v470
        %v487 = vcvt.s32.f32 %v471
        %v488 = vcvt.s32.f32 %v472
        %v489 = vcvt.s32.f32 %v473
        %v490 = vcvt.s32.f32 %v474
        %v491 = vcvt.s32.f32 %v475
        %v492 = vcvt.s32.f32 %v476
        %v493 = vcvt.s32.f32 %v477
        %v494 = vcvt.s32.f32 %v478
        %v495 = vcvt.s32.f32 %v479
        %v496 = vcvt.s32.f32 %v480
        %v497 = vcvt.s32.f32 %v481
        %v498 = vcvt.s32.f32 %v482
        %v499 = vcvt.s32.f32 %v483
        %v500 = vcvt.s32.f32 %v484
        %v501 = vpack.c.bf16 %v485, %v485
        %v502 = vpack.c.bf16 %v486, %v486
        %v503 = vpack.c.bf16 %v487, %v487
        %v504 = vpack.c.bf16 %v488, %v488
        %v505 = vpack.c.bf16 %v489, %v489
        %v506 = vpack.c.bf16 %v490, %v490
        %v507 = vpack.c.bf16 %v491, %v491
        %v508 = vpack.c.bf16 %v492, %v492
        %v509 = vpack.c.bf16 %v493, %v493
        %v510 = vpack.c.bf16 %v494, %v494
        %v511 = vpack.c.bf16 %v495, %v495
        %v512 = vpack.c.bf16 %v496, %v496
        %v513 = vpack.c.bf16 %v497, %v497
        %v514 = vpack.c.bf16 %v498, %v498
        %v515 = vpack.c.bf16 %v499, %v499
        %v516 = vpack.c.bf16 %v500, %v500
        %v517 = vunpack.c.l.bf16 %v389
        %v518 = vunpack.c.l.bf16 %v390
        %v519 = vunpack.c.l.bf16 %v391
        %v520 = vunpack.c.l.bf16 %v392
        %v521 = vunpack.c.l.bf16 %v393
        %v522 = vunpack.c.l.bf16 %v394
        %v523 = vunpack.c.l.bf16 %v395
        %v524 = vunpack.c.l.bf16 %v396
        %v525 = vunpack.c.l.bf16 %v397
        %v526 = vunpack.c.l.bf16 %v398
        %v527 = vunpack.c.l.bf16 %v399
        %v528 = vunpack.c.l.bf16 %v400
        %v529 = vunpack.c.l.bf16 %v401
        %v530 = vunpack.c.l.bf16 %v402
        %v531 = vunpack.c.l.bf16 %v403
        %v532 = vunpack.c.l.bf16 %v404
        %v533 = vunpack.c.l.bf16 %v501
        %v534 = vunpack.c.l.bf16 %v502
        %v535 = vunpack.c.l.bf16 %v503
        %v536 = vunpack.c.l.bf16 %v504
        %v537 = vunpack.c.l.bf16 %v505
        %v538 = vunpack.c.l.bf16 %v506
        %v539 = vunpack.c.l.bf16 %v507
        %v540 = vunpack.c.l.bf16 %v508
        %v541 = vunpack.c.l.bf16 %v509
        %v542 = vunpack.c.l.bf16 %v510
        %v543 = vunpack.c.l.bf16 %v511
        %v544 = vunpack.c.l.bf16 %v512
        %v545 = vunpack.c.l.bf16 %v513
        %v546 = vunpack.c.l.bf16 %v514
        %v547 = vunpack.c.l.bf16 %v515
        %v548 = vunpack.c.l.bf16 %v516
        %v549 = vadd.f32 %v517, %v533
        %v550 = vadd.f32 %v518, %v534
        %v551 = vadd.f32 %v519, %v535
        %v552 = vadd.f32 %v520, %v536
        %v553 = vadd.f32 %v521, %v537
        %v554 = vadd.f32 %v522, %v538
        %v555 = vadd.f32 %v523, %v539
        %v556 = vadd.f32 %v524, %v540
        %v557 = vadd.f32 %v525, %v541
        %v558 = vadd.f32 %v526, %v542
        %v559 = vadd.f32 %v527, %v543
        %v560 = vadd.f32 %v528, %v544
        %v561 = vadd.f32 %v529, %v545
        %v562 = vadd.f32 %v530, %v546
        %v563 = vadd.f32 %v531, %v547
        %v564 = vadd.f32 %v532, %v548
        %v565 = vpack.c.bf16 %v549, %v549
        %v566 = vpack.c.bf16 %v550, %v550
        %v567 = vpack.c.bf16 %v551, %v551
        %v568 = vpack.c.bf16 %v552, %v552
        %v569 = vpack.c.bf16 %v553, %v553
        %v570 = vpack.c.bf16 %v554, %v554
        %v571 = vpack.c.bf16 %v555, %v555
        %v572 = vpack.c.bf16 %v556, %v556
        %v573 = vpack.c.bf16 %v557, %v557
        %v574 = vpack.c.bf16 %v558, %v558
        %v575 = vpack.c.bf16 %v559, %v559
        %v576 = vpack.c.bf16 %v560, %v560
        %v577 = vpack.c.bf16 %v561, %v561
        %v578 = vpack.c.bf16 %v562, %v562
        %v579 = vpack.c.bf16 %v563, %v563
        %v580 = vpack.c.bf16 %v564, %v564
        %581 = vset.pattern.permute.xlu0 2
        %582 = vperm.xlu0 %581, %v227
        %v583 = vpop.permute.xlu0 %582
        %584 = vset.pattern.permute.xlu0 2
        %585 = vperm.xlu0 %584, %v228
        %v586 = vpop.permute.xlu0 %585
        %587 = vset.pattern.permute.xlu0 2
        %588 = vperm.xlu0 %587, %v229
        %v589 = vpop.permute.xlu0 %588
        %590 = vset.pattern.permute.xlu0 2
        %591 = vperm.xlu0 %590, %v230
        %v592 = vpop.permute.xlu0 %591
        %593 = vset.pattern.permute.xlu0 2
        %594 = vperm.xlu0 %593, %v231
        %v595 = vpop.permute.xlu0 %594
        %596 = vset.pattern.permute.xlu0 2
        %597 = vperm.xlu0 %596, %v232
        %v598 = vpop.permute.xlu0 %597
        %599 = vset.pattern.permute.xlu0 2
        %600 = vperm.xlu0 %599, %v233
        %v601 = vpop.permute.xlu0 %600
        %602 = vset.pattern.permute.xlu0 2
        %603 = vperm.xlu0 %602, %v234
        %v604 = vpop.permute.xlu0 %603
        %605 = vset.pattern.permute.xlu0 2
        %606 = vperm.xlu0 %605, %v235
        %v607 = vpop.permute.xlu0 %606
        %608 = vset.pattern.permute.xlu0 2
        %609 = vperm.xlu0 %608, %v236
        %v610 = vpop.permute.xlu0 %609
        %611 = vset.pattern.permute.xlu0 2
        %612 = vperm.xlu0 %611, %v237
        %v613 = vpop.permute.xlu0 %612
        %614 = vset.pattern.permute.xlu0 2
        %615 = vperm.xlu0 %614, %v238
        %v616 = vpop.permute.xlu0 %615
        %617 = vset.pattern.permute.xlu0 2
        %618 = vperm.xlu0 %617, %v239
        %v619 = vpop.permute.xlu0 %618
        %620 = vset.pattern.permute.xlu0 2
        %621 = vperm.xlu0 %620, %v240
        %v622 = vpop.permute.xlu0 %621
        %623 = vset.pattern.permute.xlu0 2
        %624 = vperm.xlu0 %623, %v241
        %v625 = vpop.permute.xlu0 %624
        %626 = vset.pattern.permute.xlu0 2
        %627 = vperm.xlu0 %626, %v242
        %v628 = vpop.permute.xlu0 %627
        %vm629 = vcmp.eq.s32.totalorder %v244, %v583
        %vm630 = vcmp.eq.s32.totalorder %v244, %v586
        %vm631 = vcmp.eq.s32.totalorder %v244, %v589
        %vm632 = vcmp.eq.s32.totalorder %v244, %v592
        %vm633 = vcmp.eq.s32.totalorder %v244, %v595
        %vm634 = vcmp.eq.s32.totalorder %v244, %v598
        %vm635 = vcmp.eq.s32.totalorder %v244, %v601
        %vm636 = vcmp.eq.s32.totalorder %v244, %v604
        %vm637 = vcmp.eq.s32.totalorder %v244, %v607
        %vm638 = vcmp.eq.s32.totalorder %v244, %v610
        %vm639 = vcmp.eq.s32.totalorder %v244, %v613
        %vm640 = vcmp.eq.s32.totalorder %v244, %v616
        %vm641 = vcmp.eq.s32.totalorder %v244, %v619
        %vm642 = vcmp.eq.s32.totalorder %v244, %v622
        %vm643 = vcmp.eq.s32.totalorder %v244, %v625
        %vm644 = vcmp.eq.s32.totalorder %v244, %v628
        %v645 = vsel %vm629, 1, 0
        %v646 = vsel %vm630, 1, 0
        %v647 = vsel %vm631, 1, 0
        %v648 = vsel %vm632, 1, 0
        %v649 = vsel %vm633, 1, 0
        %v650 = vsel %vm634, 1, 0
        %v651 = vsel %vm635, 1, 0
        %v652 = vsel %vm636, 1, 0
        %v653 = vsel %vm637, 1, 0
        %v654 = vsel %vm638, 1, 0
        %v655 = vsel %vm639, 1, 0
        %v656 = vsel %vm640, 1, 0
        %v657 = vsel %vm641, 1, 0
        %v658 = vsel %vm642, 1, 0
        %v659 = vsel %vm643, 1, 0
        %v660 = vsel %vm644, 1, 0
        %v661 = vcvt.s32.f32 %v645
        %v662 = vcvt.s32.f32 %v646
        %v663 = vcvt.s32.f32 %v647
        %v664 = vcvt.s32.f32 %v648
        %v665 = vcvt.s32.f32 %v649
        %v666 = vcvt.s32.f32 %v650
        %v667 = vcvt.s32.f32 %v651
        %v668 = vcvt.s32.f32 %v652
        %v669 = vcvt.s32.f32 %v653
        %v670 = vcvt.s32.f32 %v654
        %v671 = vcvt.s32.f32 %v655
        %v672 = vcvt.s32.f32 %v656
        %v673 = vcvt.s32.f32 %v657
        %v674 = vcvt.s32.f32 %v658
        %v675 = vcvt.s32.f32 %v659
        %v676 = vcvt.s32.f32 %v660
        %v677 = vpack.c.bf16 %v661, %v661
        %v678 = vpack.c.bf16 %v662, %v662
        %v679 = vpack.c.bf16 %v663, %v663
        %v680 = vpack.c.bf16 %v664, %v664
        %v681 = vpack.c.bf16 %v665, %v665
        %v682 = vpack.c.bf16 %v666, %v666
        %v683 = vpack.c.bf16 %v667, %v667
        %v684 = vpack.c.bf16 %v668, %v668
        %v685 = vpack.c.bf16 %v669, %v669
        %v686 = vpack.c.bf16 %v670, %v670
        %v687 = vpack.c.bf16 %v671, %v671
        %v688 = vpack.c.bf16 %v672, %v672
        %v689 = vpack.c.bf16 %v673, %v673
        %v690 = vpack.c.bf16 %v674, %v674
        %v691 = vpack.c.bf16 %v675, %v675
        %v692 = vpack.c.bf16 %v676, %v676
        %v693 = vunpack.c.l.bf16 %v565
        %v694 = vunpack.c.l.bf16 %v566
        %v695 = vunpack.c.l.bf16 %v567
        %v696 = vunpack.c.l.bf16 %v568
        %v697 = vunpack.c.l.bf16 %v569
        %v698 = vunpack.c.l.bf16 %v570
        %v699 = vunpack.c.l.bf16 %v571
        %v700 = vunpack.c.l.bf16 %v572
        %v701 = vunpack.c.l.bf16 %v573
        %v702 = vunpack.c.l.bf16 %v574
        %v703 = vunpack.c.l.bf16 %v575
        %v704 = vunpack.c.l.bf16 %v576
        %v705 = vunpack.c.l.bf16 %v577
        %v706 = vunpack.c.l.bf16 %v578
        %v707 = vunpack.c.l.bf16 %v579
        %v708 = vunpack.c.l.bf16 %v580
        %v709 = vunpack.c.l.bf16 %v677
        %v710 = vunpack.c.l.bf16 %v678
        %v711 = vunpack.c.l.bf16 %v679
        %v712 = vunpack.c.l.bf16 %v680
        %v713 = vunpack.c.l.bf16 %v681
        %v714 = vunpack.c.l.bf16 %v682
        %v715 = vunpack.c.l.bf16 %v683
        %v716 = vunpack.c.l.bf16 %v684
        %v717 = vunpack.c.l.bf16 %v685
        %v718 = vunpack.c.l.bf16 %v686
        %v719 = vunpack.c.l.bf16 %v687
        %v720 = vunpack.c.l.bf16 %v688
        %v721 = vunpack.c.l.bf16 %v689
        %v722 = vunpack.c.l.bf16 %v690
        %v723 = vunpack.c.l.bf16 %v691
        %v724 = vunpack.c.l.bf16 %v692
        %v725 = vadd.f32 %v693, %v709
        %v726 = vadd.f32 %v694, %v710
        %v727 = vadd.f32 %v695, %v711
        %v728 = vadd.f32 %v696, %v712
        %v729 = vadd.f32 %v697, %v713
        %v730 = vadd.f32 %v698, %v714
        %v731 = vadd.f32 %v699, %v715
        %v732 = vadd.f32 %v700, %v716
        %v733 = vadd.f32 %v701, %v717
        %v734 = vadd.f32 %v702, %v718
        %v735 = vadd.f32 %v703, %v719
        %v736 = vadd.f32 %v704, %v720
        %v737 = vadd.f32 %v705, %v721
        %v738 = vadd.f32 %v706, %v722
        %v739 = vadd.f32 %v707, %v723
        %v740 = vadd.f32 %v708, %v724
        %v741 = vpack.c.bf16 %v725, %v725
        %v742 = vpack.c.bf16 %v726, %v726
        %v743 = vpack.c.bf16 %v727, %v727
        %v744 = vpack.c.bf16 %v728, %v728
        %v745 = vpack.c.bf16 %v729, %v729
        %v746 = vpack.c.bf16 %v730, %v730
        %v747 = vpack.c.bf16 %v731, %v731
        %v748 = vpack.c.bf16 %v732, %v732
        %v749 = vpack.c.bf16 %v733, %v733
        %v750 = vpack.c.bf16 %v734, %v734
        %v751 = vpack.c.bf16 %v735, %v735
        %v752 = vpack.c.bf16 %v736, %v736
        %v753 = vpack.c.bf16 %v737, %v737
        %v754 = vpack.c.bf16 %v738, %v738
        %v755 = vpack.c.bf16 %v739, %v739
        %v756 = vpack.c.bf16 %v740, %v740
        %757 = vset.pattern.permute.xlu0 3
        %758 = vperm.xlu0 %757, %v227
        %v759 = vpop.permute.xlu0 %758
        %760 = vset.pattern.permute.xlu0 3
        %761 = vperm.xlu0 %760, %v228
        %v762 = vpop.permute.xlu0 %761
        %763 = vset.pattern.permute.xlu0 3
        %764 = vperm.xlu0 %763, %v229
        %v765 = vpop.permute.xlu0 %764
        %766 = vset.pattern.permute.xlu0 3
        %767 = vperm.xlu0 %766, %v230
        %v768 = vpop.permute.xlu0 %767
        %769 = vset.pattern.permute.xlu0 3
        %770 = vperm.xlu0 %769, %v231
        %v771 = vpop.permute.xlu0 %770
        %772 = vset.pattern.permute.xlu0 3
        %773 = vperm.xlu0 %772, %v232
        %v774 = vpop.permute.xlu0 %773
        %775 = vset.pattern.permute.xlu0 3
        %776 = vperm.xlu0 %775, %v233
        %v777 = vpop.permute.xlu0 %776
        %778 = vset.pattern.permute.xlu0 3
        %779 = vperm.xlu0 %778, %v234
        %v780 = vpop.permute.xlu0 %779
        %781 = vset.pattern.permute.xlu0 3
        %782 = vperm.xlu0 %781, %v235
        %v783 = vpop.permute.xlu0 %782
        %784 = vset.pattern.permute.xlu0 3
        %785 = vperm.xlu0 %784, %v236
        %v786 = vpop.permute.xlu0 %785
        %787 = vset.pattern.permute.xlu0 3
        %788 = vperm.xlu0 %787, %v237
        %v789 = vpop.permute.xlu0 %788
        %790 = vset.pattern.permute.xlu0 3
        %791 = vperm.xlu0 %790, %v238
        %v792 = vpop.permute.xlu0 %791
        %793 = vset.pattern.permute.xlu0 3
        %794 = vperm.xlu0 %793, %v239
        %v795 = vpop.permute.xlu0 %794
        %796 = vset.pattern.permute.xlu0 3
        %797 = vperm.xlu0 %796, %v240
        %v798 = vpop.permute.xlu0 %797
        %799 = vset.pattern.permute.xlu0 3
        %800 = vperm.xlu0 %799, %v241
        %v801 = vpop.permute.xlu0 %800
        %802 = vset.pattern.permute.xlu0 3
        %803 = vperm.xlu0 %802, %v242
        %v804 = vpop.permute.xlu0 %803
        %vm805 = vcmp.eq.s32.totalorder %v244, %v759
        %vm806 = vcmp.eq.s32.totalorder %v244, %v762
        %vm807 = vcmp.eq.s32.totalorder %v244, %v765
        %vm808 = vcmp.eq.s32.totalorder %v244, %v768
        %vm809 = vcmp.eq.s32.totalorder %v244, %v771
        %vm810 = vcmp.eq.s32.totalorder %v244, %v774
        %vm811 = vcmp.eq.s32.totalorder %v244, %v777
        %vm812 = vcmp.eq.s32.totalorder %v244, %v780
        %vm813 = vcmp.eq.s32.totalorder %v244, %v783
        %vm814 = vcmp.eq.s32.totalorder %v244, %v786
        %vm815 = vcmp.eq.s32.totalorder %v244, %v789
        %vm816 = vcmp.eq.s32.totalorder %v244, %v792
        %vm817 = vcmp.eq.s32.totalorder %v244, %v795
        %vm818 = vcmp.eq.s32.totalorder %v244, %v798
        %vm819 = vcmp.eq.s32.totalorder %v244, %v801
        %vm820 = vcmp.eq.s32.totalorder %v244, %v804
        %v821 = vsel %vm805, 1, 0
        %v822 = vsel %vm806, 1, 0
        %v823 = vsel %vm807, 1, 0
        %v824 = vsel %vm808, 1, 0
        %v825 = vsel %vm809, 1, 0
        %v826 = vsel %vm810, 1, 0
        %v827 = vsel %vm811, 1, 0
        %v828 = vsel %vm812, 1, 0
        %v829 = vsel %vm813, 1, 0
        %v830 = vsel %vm814, 1, 0
        %v831 = vsel %vm815, 1, 0
        %v832 = vsel %vm816, 1, 0
        %v833 = vsel %vm817, 1, 0
        %v834 = vsel %vm818, 1, 0
        %v835 = vsel %vm819, 1, 0
        %v836 = vsel %vm820, 1, 0
        %v837 = vcvt.s32.f32 %v821
        %v838 = vcvt.s32.f32 %v822
        %v839 = vcvt.s32.f32 %v823
        %v840 = vcvt.s32.f32 %v824
        %v841 = vcvt.s32.f32 %v825
        %v842 = vcvt.s32.f32 %v826
        %v843 = vcvt.s32.f32 %v827
        %v844 = vcvt.s32.f32 %v828
        %v845 = vcvt.s32.f32 %v829
        %v846 = vcvt.s32.f32 %v830
        %v847 = vcvt.s32.f32 %v831
        %v848 = vcvt.s32.f32 %v832
        %v849 = vcvt.s32.f32 %v833
        %v850 = vcvt.s32.f32 %v834
        %v851 = vcvt.s32.f32 %v835
        %v852 = vcvt.s32.f32 %v836
        %v853 = vpack.c.bf16 %v837, %v837
        %v854 = vpack.c.bf16 %v838, %v838
        %v855 = vpack.c.bf16 %v839, %v839
        %v856 = vpack.c.bf16 %v840, %v840
        %v857 = vpack.c.bf16 %v841, %v841
        %v858 = vpack.c.bf16 %v842, %v842
        %v859 = vpack.c.bf16 %v843, %v843
        %v860 = vpack.c.bf16 %v844, %v844
        %v861 = vpack.c.bf16 %v845, %v845
        %v862 = vpack.c.bf16 %v846, %v846
        %v863 = vpack.c.bf16 %v847, %v847
        %v864 = vpack.c.bf16 %v848, %v848
        %v865 = vpack.c.bf16 %v849, %v849
        %v866 = vpack.c.bf16 %v850, %v850
        %v867 = vpack.c.bf16 %v851, %v851
        %v868 = vpack.c.bf16 %v852, %v852
        %v869 = vunpack.c.l.bf16 %v741
        %v870 = vunpack.c.l.bf16 %v742
        %v871 = vunpack.c.l.bf16 %v743
        %v872 = vunpack.c.l.bf16 %v744
        %v873 = vunpack.c.l.bf16 %v745
        %v874 = vunpack.c.l.bf16 %v746
        %v875 = vunpack.c.l.bf16 %v747
        %v876 = vunpack.c.l.bf16 %v748
        %v877 = vunpack.c.l.bf16 %v749
        %v878 = vunpack.c.l.bf16 %v750
        %v879 = vunpack.c.l.bf16 %v751
        %v880 = vunpack.c.l.bf16 %v752
        %v881 = vunpack.c.l.bf16 %v753
        %v882 = vunpack.c.l.bf16 %v754
        %v883 = vunpack.c.l.bf16 %v755
        %v884 = vunpack.c.l.bf16 %v756
        %v885 = vunpack.c.l.bf16 %v853
        %v886 = vunpack.c.l.bf16 %v854
        %v887 = vunpack.c.l.bf16 %v855
        %v888 = vunpack.c.l.bf16 %v856
        %v889 = vunpack.c.l.bf16 %v857
        %v890 = vunpack.c.l.bf16 %v858
        %v891 = vunpack.c.l.bf16 %v859
        %v892 = vunpack.c.l.bf16 %v860
        %v893 = vunpack.c.l.bf16 %v861
        %v894 = vunpack.c.l.bf16 %v862
        %v895 = vunpack.c.l.bf16 %v863
        %v896 = vunpack.c.l.bf16 %v864
        %v897 = vunpack.c.l.bf16 %v865
        %v898 = vunpack.c.l.bf16 %v866
        %v899 = vunpack.c.l.bf16 %v867
        %v900 = vunpack.c.l.bf16 %v868
        %v901 = vadd.f32 %v869, %v885
        %v902 = vadd.f32 %v870, %v886
        %v903 = vadd.f32 %v871, %v887
        %v904 = vadd.f32 %v872, %v888
        %v905 = vadd.f32 %v873, %v889
        %v906 = vadd.f32 %v874, %v890
        %v907 = vadd.f32 %v875, %v891
        %v908 = vadd.f32 %v876, %v892
        %v909 = vadd.f32 %v877, %v893
        %v910 = vadd.f32 %v878, %v894
        %v911 = vadd.f32 %v879, %v895
        %v912 = vadd.f32 %v880, %v896
        %v913 = vadd.f32 %v881, %v897
        %v914 = vadd.f32 %v882, %v898
        %v915 = vadd.f32 %v883, %v899
        %v916 = vadd.f32 %v884, %v900
        %v917 = vpack.c.bf16 %v902, %v901
        %v918 = vpack.c.bf16 %v904, %v903
        %v919 = vpack.c.bf16 %v906, %v905
        %v920 = vpack.c.bf16 %v908, %v907
        %v921 = vpack.c.bf16 %v910, %v909
        %v922 = vpack.c.bf16 %v912, %v911
        %v923 = vpack.c.bf16 %v914, %v913
        %v924 = vpack.c.bf16 %v916, %v915
        %v925 = vld [vmem:[%s1] sm:$0xf]
        %v926 = vld [vmem:[%s1 + $0x4] sm:$0xf]
        %v927 = vld [vmem:[%s1 + $0x8] sm:$0xf]
        %v928 = vld [vmem:[%s1 + $0xc] sm:$0xf]
        %v929 = vld [vmem:[%s1 + $0x10] sm:$0xf]
        %v930 = vld [vmem:[%s1 + $0x14] sm:$0xf]
        %v931 = vld [vmem:[%s1 + $0x18] sm:$0xf]
        %v932 = vld [vmem:[%s1 + $0x1c] sm:$0xf]
        %v933 = vld [vmem:[%s1 + $0x20] sm:$0xf]
        %v934 = vld [vmem:[%s1 + $0x24] sm:$0xf]
        %v935 = vld [vmem:[%s1 + $0x28] sm:$0xf]
        %v936 = vld [vmem:[%s1 + $0x2c] sm:$0xf]
        %v937 = vld [vmem:[%s1 + $0x30] sm:$0xf]
        %v938 = vld [vmem:[%s1 + $0x34] sm:$0xf]
        %v939 = vld [vmem:[%s1 + $0x38] sm:$0xf]
        %v940 = vld [vmem:[%s1 + $0x3c] sm:$0xf]
        %v941 = vld [vmem:[%s2] sm:$0x1]
        %v943 = vperm.slane %v941, 0
        %v961 = vunpack.c.l.b16 %v925
        %v962 = vunpack.c.l.b16 %v926
        %v963 = vunpack.c.l.b16 %v927
        %v964 = vunpack.c.l.b16 %v928
        %v965 = vunpack.c.l.b16 %v929
        %v966 = vunpack.c.l.b16 %v930
        %v967 = vunpack.c.l.b16 %v931
        %v968 = vunpack.c.l.b16 %v932
        %v969 = vunpack.c.l.b16 %v933
        %v970 = vunpack.c.l.b16 %v934
        %v971 = vunpack.c.l.b16 %v935
        %v972 = vunpack.c.l.b16 %v936
        %v973 = vunpack.c.l.b16 %v937
        %v974 = vunpack.c.l.b16 %v938
        %v975 = vunpack.c.l.b16 %v939
        %v976 = vunpack.c.l.b16 %v940
        %v977 = vpack.c.b16 %v962, %v961
        %v978 = vpack.c.b16 %v964, %v963
        %v979 = vpack.c.b16 %v966, %v965
        %v980 = vpack.c.b16 %v968, %v967
        %v981 = vpack.c.b16 %v970, %v969
        %v982 = vpack.c.b16 %v972, %v971
        %v983 = vpack.c.b16 %v974, %v973
        %v984 = vpack.c.b16 %v976, %v975
        %993 = vmatpush.bf16.msra.mxu0 %v984
        %994 = vmatpush.bf16.msra.mxu0 %v983
        %995 = vmatpush.bf16.msra.mxu0 %v982
        %996 = vmatpush.bf16.msra.mxu0 %v981
        %997 = vmatpush.bf16.msra.mxu0 %v980
        %998 = vmatpush.bf16.msra.mxu0 %v979
        %999 = vmatpush.bf16.msra.mxu0 %v978
        %1000 = vmatpush.bf16.msra.mxu0 %v977
        %1001 = vmatmul.bf16.gmra.mxu0 %v917
        %v1002 = vpop.f32.mrf.mxu0
        %v1003 = vadd.f32 %v943, %v1002
        %v1004 = vpop.f32.mrf.mxu0
        %v1005 = vadd.f32 %v943, %v1004
        %1006 = vmatmul.bf16.gmra.mxu0 %v918
        %v1007 = vpop.f32.mrf.mxu0
        %v1008 = vadd.f32 %v943, %v1007
        %v1009 = vpop.f32.mrf.mxu0
        %v1010 = vadd.f32 %v943, %v1009
        %1011 = vmatmul.bf16.gmra.mxu0 %v919
        %v1012 = vpop.f32.mrf.mxu0
        %v1013 = vadd.f32 %v943, %v1012
        %v1014 = vpop.f32.mrf.mxu0
        %v1015 = vadd.f32 %v943, %v1014
        %1016 = vmatmul.bf16.gmra.mxu0 %v920
        %v1017 = vpop.f32.mrf.mxu0
        %v1018 = vadd.f32 %v943, %v1017
        %v1019 = vpop.f32.mrf.mxu0
        %v1020 = vadd.f32 %v943, %v1019
        %1021 = vmatmul.bf16.gmra.mxu0 %v921
        %v1022 = vpop.f32.mrf.mxu0
        %v1023 = vadd.f32 %v943, %v1022
        %v1024 = vpop.f32.mrf.mxu0
        %v1025 = vadd.f32 %v943, %v1024
        %1026 = vmatmul.bf16.gmra.mxu0 %v922
        %v1027 = vpop.f32.mrf.mxu0
        %v1028 = vadd.f32 %v943, %v1027
        %v1029 = vpop.f32.mrf.mxu0
        %v1030 = vadd.f32 %v943, %v1029
        %1031 = vmatmul.bf16.gmra.mxu0 %v923
        %v1032 = vpop.f32.mrf.mxu0
        %v1033 = vadd.f32 %v943, %v1032
        %v1034 = vpop.f32.mrf.mxu0
        %v1035 = vadd.f32 %v943, %v1034
        %1036 = vmatmul.bf16.gmra.mxu0 %v924
        %v1037 = vpop.f32.mrf.mxu0
        %v1038 = vadd.f32 %v943, %v1037
        %v1039 = vpop.f32.mrf.mxu0
        %v1040 = vadd.f32 %v943, %v1039
        %1041 = vdwg.mxu0
        %v1042 = vmax.f32 %v1003, 0.0
        %v1043 = vmax.f32 %v1005, 0.0
        %v1044 = vmax.f32 %v1008, 0.0
        %v1045 = vmax.f32 %v1010, 0.0
        %v1046 = vmax.f32 %v1013, 0.0
        %v1047 = vmax.f32 %v1015, 0.0
        %v1048 = vmax.f32 %v1018, 0.0
        %v1049 = vmax.f32 %v1020, 0.0
        %v1050 = vmax.f32 %v1023, 0.0
        %v1051 = vmax.f32 %v1025, 0.0
        %v1052 = vmax.f32 %v1028, 0.0
        %v1053 = vmax.f32 %v1030, 0.0
        %v1054 = vmax.f32 %v1033, 0.0
        %v1055 = vmax.f32 %v1035, 0.0
        %v1056 = vmax.f32 %v1038, 0.0
        %v1057 = vmax.f32 %v1040, 0.0
        %v1058 = vpack.c.bf16 %v1043, %v1042
        %v1059 = vpack.c.bf16 %v1045, %v1044
        %v1060 = vpack.c.bf16 %v1047, %v1046
        %v1061 = vpack.c.bf16 %v1049, %v1048
        %v1062 = vpack.c.bf16 %v1051, %v1050
        %v1063 = vpack.c.bf16 %v1053, %v1052
        %v1064 = vpack.c.bf16 %v1055, %v1054
        %v1065 = vpack.c.bf16 %v1057, %v1056
        %v1066 = vld [vmem:[%s3] sm:$0xf]
        %v1067 = vld [vmem:[%s3 + $0x4] sm:$0xf]
        %v1068 = vld [vmem:[%s3 + $0x8] sm:$0xf]
        %v1069 = vld [vmem:[%s3 + $0xc] sm:$0xf]
        %v1070 = vld [vmem:[%s3 + $0x10] sm:$0xf]
        %v1071 = vld [vmem:[%s3 + $0x14] sm:$0xf]
        %v1072 = vld [vmem:[%s3 + $0x18] sm:$0xf]
        %v1073 = vld [vmem:[%s3 + $0x1c] sm:$0xf]
        %v1074 = vld [vmem:[%s4] sm:$0x1]
        %v1076 = vperm.slane %v1074, 0
        %v1086 = vunpack.c.l.b16 %v1066
        %v1087 = vunpack.c.l.b16 %v1067
        %v1088 = vunpack.c.l.b16 %v1068
        %v1089 = vunpack.c.l.b16 %v1069
        %v1090 = vunpack.c.l.b16 %v1070
        %v1091 = vunpack.c.l.b16 %v1071
        %v1092 = vunpack.c.l.b16 %v1072
        %v1093 = vunpack.c.l.b16 %v1073
        %v1094 = vpack.c.b16 %v1087, %v1086
        %v1095 = vpack.c.b16 %v1089, %v1088
        %v1096 = vpack.c.b16 %v1091, %v1090
        %v1097 = vpack.c.b16 %v1093, %v1092
        %vm1102 = vcmask 523264
        %v1104 = vsel %vm1102, %v1058, 0
        %v1107 = vsel %vm1102, %v1059, 0
        %v1110 = vsel %vm1102, %v1060, 0
        %v1113 = vsel %vm1102, %v1061, 0
        %v1116 = vsel %vm1102, %v1062, 0
        %v1119 = vsel %vm1102, %v1063, 0
        %v1122 = vsel %vm1102, %v1064, 0
        %v1125 = vsel %vm1102, %v1065, 0
        %1127 = vmatpush.bf16.msra.mxu0 0
        %1128 = vmatpush.bf16.msra.mxu0 0
        %1129 = vmatpush.bf16.msra.mxu0 0
        %1130 = vmatpush.bf16.msra.mxu0 0
        %1131 = vmatpush.bf16.msra.mxu0 %v1097
        %1132 = vmatpush.bf16.msra.mxu0 %v1096
        %1133 = vmatpush.bf16.msra.mxu0 %v1095
        %1134 = vmatpush.bf16.msra.mxu0 %v1094
        %1135 = vmatmul.bf16.gmra.mxu0 %v1104
        %v1136 = vpop.f32.mrf.mxu0
        %v1137 = vadd.f32 %v1076, %v1136
        %v1138 = vpop.f32.mrf.mxu0
        %v1139 = vadd.f32 %v1076, %v1138
        %1140 = vmatmul.bf16.gmra.mxu0 %v1107
        %v1141 = vpop.f32.mrf.mxu0
        %v1142 = vadd.f32 %v1076, %v1141
        %v1143 = vpop.f32.mrf.mxu0
        %v1144 = vadd.f32 %v1076, %v1143
        %1145 = vmatmul.bf16.gmra.mxu0 %v1110
        %v1146 = vpop.f32.mrf.mxu0
        %v1147 = vadd.f32 %v1076, %v1146
        %v1148 = vpop.f32.mrf.mxu0
        %v1149 = vadd.f32 %v1076, %v1148
        %1150 = vmatmul.bf16.gmra.mxu0 %v1113
        %v1151 = vpop.f32.mrf.mxu0
        %v1152 = vadd.f32 %v1076, %v1151
        %v1153 = vpop.f32.mrf.mxu0
        %v1154 = vadd.f32 %v1076, %v1153
        %1155 = vmatmul.bf16.gmra.mxu0 %v1116
        %v1156 = vpop.f32.mrf.mxu0
        %v1157 = vadd.f32 %v1076, %v1156
        %v1158 = vpop.f32.mrf.mxu0
        %v1159 = vadd.f32 %v1076, %v1158
        %1160 = vmatmul.bf16.gmra.mxu0 %v1119
        %v1161 = vpop.f32.mrf.mxu0
        %v1162 = vadd.f32 %v1076, %v1161
        %v1163 = vpop.f32.mrf.mxu0
        %v1164 = vadd.f32 %v1076, %v1163
        %1165 = vmatmul.bf16.gmra.mxu0 %v1122
        %v1166 = vpop.f32.mrf.mxu0
        %v1167 = vadd.f32 %v1076, %v1166
        %v1168 = vpop.f32.mrf.mxu0
        %v1169 = vadd.f32 %v1076, %v1168
        %1170 = vmatmul.bf16.gmra.mxu0 %v1125
        %v1171 = vpop.f32.mrf.mxu0
        %v1172 = vadd.f32 %v1076, %v1171
        %v1173 = vpop.f32.mrf.mxu0
        %v1174 = vadd.f32 %v1076, %v1173
        %1175 = vdwg.mxu0
        %1176 = vmax.xlane.f32.xlu0 %v1137
        %v1177 = vpop.xlane.xlu0 %1176
        %1178 = vmax.xlane.f32.xlu0 %v1139
        %v1179 = vpop.xlane.xlu0 %1178
        %1180 = vmax.xlane.f32.xlu0 %v1142
        %v1181 = vpop.xlane.xlu0 %1180
        %1182 = vmax.xlane.f32.xlu0 %v1144
        %v1183 = vpop.xlane.xlu0 %1182
        %1184 = vmax.xlane.f32.xlu0 %v1147
        %v1185 = vpop.xlane.xlu0 %1184
        %1186 = vmax.xlane.f32.xlu0 %v1149
        %v1187 = vpop.xlane.xlu0 %1186
        %1188 = vmax.xlane.f32.xlu0 %v1152
        %v1189 = vpop.xlane.xlu0 %1188
        %1190 = vmax.xlane.f32.xlu0 %v1154
        %v1191 = vpop.xlane.xlu0 %1190
        %1192 = vmax.xlane.f32.xlu0 %v1157
        %v1193 = vpop.xlane.xlu0 %1192
        %1194 = vmax.xlane.f32.xlu0 %v1159
        %v1195 = vpop.xlane.xlu0 %1194
        %1196 = vmax.xlane.f32.xlu0 %v1162
        %v1197 = vpop.xlane.xlu0 %1196
        %1198 = vmax.xlane.f32.xlu0 %v1164
        %v1199 = vpop.xlane.xlu0 %1198
        %1200 = vmax.xlane.f32.xlu0 %v1167
        %v1201 = vpop.xlane.xlu0 %1200
        %1202 = vmax.xlane.f32.xlu0 %v1169
        %v1203 = vpop.xlane.xlu0 %1202
        %1204 = vmax.xlane.f32.xlu0 %v1172
        %v1205 = vpop.xlane.xlu0 %1204
        %1206 = vmax.xlane.f32.xlu0 %v1174
        %v1207 = vpop.xlane.xlu0 %1206
        %v1208 = vsub.f32 %v1137, %v1177
        %v1209 = vsub.f32 %v1139, %v1179
        %v1210 = vsub.f32 %v1142, %v1181
        %v1211 = vsub.f32 %v1144, %v1183
        %v1212 = vsub.f32 %v1147, %v1185
        %v1213 = vsub.f32 %v1149, %v1187
        %v1214 = vsub.f32 %v1152, %v1189
        %v1215 = vsub.f32 %v1154, %v1191
        %v1216 = vsub.f32 %v1157, %v1193
        %v1217 = vsub.f32 %v1159, %v1195
        %v1218 = vsub.f32 %v1162, %v1197
        %v1219 = vsub.f32 %v1164, %v1199
        %v1220 = vsub.f32 %v1167, %v1201
        %v1221 = vsub.f32 %v1169, %v1203
        %v1222 = vsub.f32 %v1172, %v1205
        %v1223 = vsub.f32 %v1174, %v1207
        %v1224 = vmul.f32 %v1208, 1.442695
        %v1225 = vpow.pop %v1224
        %v1226 = vmul.f32 %v1209, 1.442695
        %v1227 = vpow.pop %v1226
        %v1228 = vmul.f32 %v1210, 1.442695
        %v1229 = vpow.pop %v1228
        %v1230 = vmul.f32 %v1211, 1.442695
        %v1231 = vpow.pop %v1230
        %v1232 = vmul.f32 %v1212, 1.442695
        %v1233 = vpow.pop %v1232
        %v1234 = vmul.f32 %v1213, 1.442695
        %v1235 = vpow.pop %v1234
        %v1236 = vmul.f32 %v1214, 1.442695
        %v1237 = vpow.pop %v1236
        %v1238 = vmul.f32 %v1215, 1.442695
        %v1239 = vpow.pop %v1238
        %v1240 = vmul.f32 %v1216, 1.442695
        %v1241 = vpow.pop %v1240
        %v1242 = vmul.f32 %v1217, 1.442695
        %v1243 = vpow.pop %v1242
        %v1244 = vmul.f32 %v1218, 1.442695
        %v1245 = vpow.pop %v1244
        %v1246 = vmul.f32 %v1219, 1.442695
        %v1247 = vpow.pop %v1246
        %v1248 = vmul.f32 %v1220, 1.442695
        %v1249 = vpow.pop %v1248
        %v1250 = vmul.f32 %v1221, 1.442695
        %v1251 = vpow.pop %v1250
        %v1252 = vmul.f32 %v1222, 1.442695
        %v1253 = vpow.pop %v1252
        %v1254 = vmul.f32 %v1223, 1.442695
        %v1255 = vpow.pop %v1254
        %1256 = vadd.xlane.f32.xlu0 %v1225
        %v1257 = vpop.xlane.xlu0 %1256
        %1258 = vadd.xlane.f32.xlu0 %v1227
        %v1259 = vpop.xlane.xlu0 %1258
        %1260 = vadd.xlane.f32.xlu0 %v1229
        %v1261 = vpop.xlane.xlu0 %1260
        %1262 = vadd.xlane.f32.xlu0 %v1231
        %v1263 = vpop.xlane.xlu0 %1262
        %1264 = vadd.xlane.f32.xlu0 %v1233
        %v1265 = vpop.xlane.xlu0 %1264
        %1266 = vadd.xlane.f32.xlu0 %v1235
        %v1267 = vpop.xlane.xlu0 %1266
        %1268 = vadd.xlane.f32.xlu0 %v1237
        %v1269 = vpop.xlane.xlu0 %1268
        %1270 = vadd.xlane.f32.xlu0 %v1239
        %v1271 = vpop.xlane.xlu0 %1270
        %1272 = vadd.xlane.f32.xlu0 %v1241
        %v1273 = vpop.xlane.xlu0 %1272
        %1274 = vadd.xlane.f32.xlu0 %v1243
        %v1275 = vpop.xlane.xlu0 %1274
        %1276 = vadd.xlane.f32.xlu0 %v1245
        %v1277 = vpop.xlane.xlu0 %1276
        %1278 = vadd.xlane.f32.xlu0 %v1247
        %v1279 = vpop.xlane.xlu0 %1278
        %1280 = vadd.xlane.f32.xlu0 %v1249
        %v1281 = vpop.xlane.xlu0 %1280
        %1282 = vadd.xlane.f32.xlu0 %v1251
        %v1283 = vpop.xlane.xlu0 %1282
        %1284 = vadd.xlane.f32.xlu0 %v1253
        %v1285 = vpop.xlane.xlu0 %1284
        %1286 = vadd.xlane.f32.xlu0 %v1255
        %v1287 = vpop.xlane.xlu0 %1286
        %v1288 = vlog2.pop %v1257
        %v1289 = vmul.f32 %v1288, 0.6931472
        %v1290 = vlog2.pop %v1259
        %v1291 = vmul.f32 %v1290, 0.6931472
        %v1292 = vlog2.pop %v1261
        %v1293 = vmul.f32 %v1292, 0.6931472
        %v1294 = vlog2.pop %v1263
        %v1295 = vmul.f32 %v1294, 0.6931472
        %v1296 = vlog2.pop %v1265
        %v1297 = vmul.f32 %v1296, 0.6931472
        %v1298 = vlog2.pop %v1267
        %v1299 = vmul.f32 %v1298, 0.6931472
        %v1300 = vlog2.pop %v1269
        %v1301 = vmul.f32 %v1300, 0.6931472
        %v1302 = vlog2.pop %v1271
        %v1303 = vmul.f32 %v1302, 0.6931472
        %v1304 = vlog2.pop %v1273
        %v1305 = vmul.f32 %v1304, 0.6931472
        %v1306 = vlog2.pop %v1275
        %v1307 = vmul.f32 %v1306, 0.6931472
        %v1308 = vlog2.pop %v1277
        %v1309 = vmul.f32 %v1308, 0.6931472
        %v1310 = vlog2.pop %v1279
        %v1311 = vmul.f32 %v1310, 0.6931472
        %v1312 = vlog2.pop %v1281
        %v1313 = vmul.f32 %v1312, 0.6931472
        %v1314 = vlog2.pop %v1283
        %v1315 = vmul.f32 %v1314, 0.6931472
        %v1316 = vlog2.pop %v1285
        %v1317 = vmul.f32 %v1316, 0.6931472
        %v1318 = vlog2.pop %v1287
        %v1319 = vmul.f32 %v1318, 0.6931472
        %v1320 = vsub.f32 %v1208, %v1289
        %v1321 = vsub.f32 %v1209, %v1291
        %v1322 = vsub.f32 %v1210, %v1293
        %v1323 = vsub.f32 %v1211, %v1295
        %v1324 = vsub.f32 %v1212, %v1297
        %v1325 = vsub.f32 %v1213, %v1299
        %v1326 = vsub.f32 %v1214, %v1301
        %v1327 = vsub.f32 %v1215, %v1303
        %v1328 = vsub.f32 %v1216, %v1305
        %v1329 = vsub.f32 %v1217, %v1307
        %v1330 = vsub.f32 %v1218, %v1309
        %v1331 = vsub.f32 %v1219, %v1311
        %v1332 = vsub.f32 %v1220, %v1313
        %v1333 = vsub.f32 %v1221, %v1315
        %v1334 = vsub.f32 %v1222, %v1317
        %v1335 = vsub.f32 %v1223, %v1319
        %1336 = vst [vmem:[%s218] sm:$0xff] %v1320
        %1337 = vst [vmem:[%s218 + $0x8] sm:$0xff] %v1321
        %1338 = vst [vmem:[%s218 + $0x10] sm:$0xff] %v1322
        %1339 = vst [vmem:[%s218 + $0x18] sm:$0xff] %v1323
        %1340 = vst [vmem:[%s218 + $0x20] sm:$0xff] %v1324
        %1341 = vst [vmem:[%s218 + $0x28] sm:$0xff] %v1325
        %1342 = vst [vmem:[%s218 + $0x30] sm:$0xff] %v1326
        %1343 = vst [vmem:[%s218 + $0x38] sm:$0xff] %v1327
        %1344 = vst [vmem:[%s218 + $0x40] sm:$0xff] %v1328
        %1345 = vst [vmem:[%s218 + $0x48] sm:$0xff] %v1329
        %1346 = vst [vmem:[%s218 + $0x50] sm:$0xff] %v1330
        %1347 = vst [vmem:[%s218 + $0x58] sm:$0xff] %v1331
        %1348 = vst [vmem:[%s218 + $0x60] sm:$0xff] %v1332
        %1349 = vst [vmem:[%s218 + $0x68] sm:$0xff] %v1333
        %1350 = vst [vmem:[%s218 + $0x70] sm:$0xff] %v1334
        %1351 = vst [vmem:[%s218 + $0x78] sm:$0xff] %v1335
        %s1352 = sand.u32 %s137, 1
        %s1353 = scalar_lea.sflag [#allocation3], %s1352
        %s1354 = sand.u32 %s137, 1
        %s1355 = smul.addr %s1354, 128
        %s1356 = scalar_lea.vmem [#allocation2], %s1355
        // Predicated region
        $region41: #{tpu_custom_call.1} parent=39 // pred_check
          %p1357 = pneg %p147
        $region42: #{tpu_custom_call.1} parent=39 // pred_check_branch
          %1359 = sbr.rel (%p1357) target = $region44
        $region43: #{tpu_custom_call.1} parent=39 // pred_region
          %s1360 = smul.u32 16, %s19
          %1362 = vsyncadd %s1353, 0
          %s1363 = smul.addr %s1360, 8
          %s1364 = scalar_lea.hbm %s5, %s1363
          %s1365 = sshll.u32 %s1356, 4
          %s1366 = int_to_ptr.vmem [resolvable:$true] %s1365
          %s1367 = sshll.u32 %s1364, 4
          %s1368 = int_to_ptr.hbm [resolvable:$true] %s1367
          %1373 = dma.vmem_to_hbm [thread:$0]  %s1366, 2048, %s1368, %s1353, 128, 128, 8
        $region44: #{tpu_custom_call.1} parent=39 // pred_fallthru
          _
      $region40: #{tpu_custom_call.1} parent=5 // pred_fallthru
        _
      %p1374 = scmp.le.s32.totalorder 2, %s14
      // Predicated region
      $region45: #{tpu_custom_call.1} parent=5 // pred_check
        %p1375 = pneg %p1374
      $region46: #{tpu_custom_call.1} parent=5 // pred_check_branch
        %1377 = sbr.rel (%p1375) target = $region48
      $region47: #{tpu_custom_call.1} parent=5 // pred_region
        %s1378 = ssub.s32 %s14, 2
        // Predicated region
        $region49: #{tpu_custom_call.1} parent=47 // pred_check
          %p1379 = pneg %p153
        $region50: #{tpu_custom_call.1} parent=47 // pred_check_branch
          %1381 = sbr.rel (%p1379) target = $region52
        $region51: #{tpu_custom_call.1} parent=47 // pred_region
          %s1382 = sand.u32 %s138, 1
          %s1383 = scalar_lea.sflag [#allocation3], %s1382
          %s1384 = sand.u32 %s138, 1
          %s1385 = smul.addr %s1384, 128
          %s1386 = scalar_lea.vmem [#allocation2], %s1385
          %1388 = dma.done %s1383, 2048
        $region52: #{tpu_custom_call.1} parent=47 // pred_fallthru
          _
      $region48: #{tpu_custom_call.1} parent=5 // pred_fallthru
        _
    $region6: #{tpu_custom_call.1} parent=1 // loop_footer
      %s18 = sadd.s32 1, %s14
    $region7: #{tpu_custom_call.1} parent=1 // loop_footer_branch
      %13 = sbr.rel target = $region3
    $region8: #{tpu_custom_call.1} parent=1 // loop_exit
      _
    %1389 = vsyncpa [#allocation3], 1
    %s1390 = scalar_lea.sflag [#allocation3], 1
    %1391 = vsyncpa %s1390, 1

</llo_original>
